<compile_context>
chip_gen: v7x
topology: tpu7x:2x2x1
jax: 0.10.0
libtpu: 0.0.40
codegen_flags: <defaults>
</compile_context>

<pallas_src>
import functools

import jax
import jax.numpy as jnp
from jax.experimental import pallas as pl
from jax.experimental.pallas import tpu as pltpu

_BIG = 10000.0


# ---------------------------------------------------------------------------
# Kernels
# ---------------------------------------------------------------------------

def _sanitize(x):
    """torch.nan_to_num(nan=0, posinf=1e4, neginf=-1e4) + clamp(-1e4, 1e4).

    Done in the native dtype (keeps bf16 on packed vregs), then upcast to f32 for stats.
    """
    x = jnp.where(jnp.isnan(x), 0.0, x)
    x = jnp.clip(x, -_BIG, _BIG)            # also maps +-inf to +-1e4
    return x.astype(jnp.float32)


def _sgn_kernel_flat(x_ref, w_ref, b_ref, o_ref, *, eps):
    """Lane-dense path.  x/o block: (1, Gb, M) with M = Cg*H*W.
    w/b block: (1, Gb, M) f32 per-element expanded affine params (streamed per group-chunk)."""
    x = _sanitize(x_ref[0])                                   # (Gb, M) f32
    mean = jnp.mean(x, axis=-1, keepdims=True)                # (Gb, 1)
    d = x - mean
    var = jnp.mean(d * d, axis=-1, keepdims=True)
    inv = jax.lax.rsqrt(var + jnp.float32(eps))
    o_ref[0] = (d * (inv * w_ref[0]) + b_ref[0]).astype(o_ref.dtype)


def _sgn_kernel_grouped(x_ref, w_ref, b_ref, o_ref, *, eps):
    """Dense 4-D path (Cg % 8 == 0 and L % 128 == 0: no padding waste).
    x/o block: (1, Gb, Cg, L); w/b block: (1, Gb, Cg, 1) f32."""
    x = _sanitize(x_ref[0])                                   # (Gb, Cg, L) f32
    mean = jnp.mean(x, axis=(1, 2), keepdims=True)            # (Gb, 1, 1)
    d = x - mean
    var = jnp.mean(d * d, axis=(1, 2), keepdims=True)
    inv = jax.lax.rsqrt(var + jnp.float32(eps))
    o_ref[0] = (d * (inv * w_ref[0]) + b_ref[0]).astype(o_ref.dtype)


def _sgn_kernel_chunked(x_ref, w_ref, b_ref, o_ref, stat_ref, *, eps, n_chunks):
    """Large-group fallback.  grid = (N, G, 2*n_chunks); axis 2 is 'arbitrary'.

    Steps [0, n_chunks): accumulate (count, mean, M2) per group in SMEM (Chan's merge).
    Steps [n_chunks, 2*n_chunks): re-read each chunk and normalize + affine.
    x/o block: (1, 1, Cg, Lc); w/b block: (1, Cg, 1) f32; stat_ref: SMEM (3,) f32.
    """
    t = pl.program_id(2)

    @pl.when(t < n_chunks)
    def _accumulate():
        x = _sanitize(x_ref[0, 0])                            # (Cg, Lc) f32
        cnt = jnp.float32(x.size)
        m_b = jnp.sum(x) / cnt
        d = x - m_b
        m2_b = jnp.sum(d * d)

        @pl.when(t == 0)
        def _():
            stat_ref[0] = cnt
            stat_ref[1] = m_b
            stat_ref[2] = m2_b

        @pl.when(t > 0)
        def _():
            n_a = stat_ref[0]
            m_a = stat_ref[1]
            m2_a = stat_ref[2]
            n_ab = n_a + cnt
            delta = m_b - m_a
            stat_ref[0] = n_ab
            stat_ref[1] = m_a + delta * (cnt / n_ab)
            stat_ref[2] = m2_a + m2_b + delta * delta * (n_a * cnt / n_ab)

    @pl.when(t >= n_chunks)
    def _normalize():
        x = _sanitize(x_ref[0, 0])                            # (Cg, Lc) f32
        mean = stat_ref[1]
        var = stat_ref[2] / stat_ref[0]
        inv = jax.lax.rsqrt(var + jnp.float32(eps))
        o_ref[0, 0] = ((x - mean) * (inv * w_ref[0]) + b_ref[0]).astype(o_ref.dtype)


# ---------------------------------------------------------------------------
# Wrapper / tiling logic
# ---------------------------------------------------------------------------

def _round_up(a, b):
    return -(-a // b) * b


def _divisors(n):
    small, large = [], []
    d = 1
    while d * d <= n:
        if n % d == 0:
            small.append(d)
            if d != n // d:
                large.append(n // d)
        d += 1
    return sorted(small + large)


def _vmem_caps():
    """Returns (vmem_limit_cap, default target block bytes in f32-equivalent)."""
    try:
        cap = int(pltpu.get_tpu_info().vmem_capacity_bytes)
    except Exception:
        cap = 64 << 20                       # conservative: assume v7x-class 64 MiB
    if cap <= (64 << 20):                    # v7x: leave headroom for compiler scratch
        return 48 << 20, 4 << 20
    return 96 << 20, 8 << 20                 # v5e / v6e: 128 MiB physical VMEM


def _vmem_need(block_elems, itemsize, per_elem_wb):
    """Honest per-step VMEM estimate: in/out double buffers in the native dtype,
    streamed f32 affine params (flat path), ~3 f32 temporaries, plus slack."""
    need = block_elems * (4 * itemsize + 3 * 4)
    need += (2 * 2 * 4 * block_elems) if per_elem_wb else (256 << 10)
    return need + (2 << 20)


def _choose_gb(valid_gbs, G, N, per_group_elems, itemsize, target_bytes, vmem_cap,
               per_elem_wb):
    """Largest valid groups-per-block within the VMEM cap and block-size target, then
    shrink (if blocks stay >= 256 KiB) until the grid has >= ~8 steps to pipeline."""
    def need(gb):
        return _vmem_need(gb * per_group_elems, itemsize, per_elem_wb)

    def native(gb):
        return gb * per_group_elems * itemsize

    fitting = [g for g in valid_gbs if need(g) <= vmem_cap]
    if not fitting:
        return None
    under = [g for g in fitting if native(g) <= target_bytes]
    gb = max(under) if under else min(fitting)
    while (G // gb) * N < 8:
        smaller = [g for g in valid_gbs if g < gb and native(g) >= (256 << 10)]
        if not smaller:
            break
        gb = max(smaller)
    return gb


def safe_group_norm(x, weight, bias, *, num_groups, eps=1e-4,
                    target_block_bytes=None, max_group_block_bytes=None):
    """SafeGroupNorm forward.  x: (N, C, H, W); weight/bias: (C,).  Same shape/dtype out.

    Statistics are always computed in float32 inside the kernel.
    """
    N, C, H, W = x.shape
    G = int(num_groups)
    assert C % G == 0, "num_channels must be divisible by num_groups"
    Cg = C // G
    L = H * W
    M = Cg * L
    itemsize = jnp.dtype(x.dtype).itemsize
    eps = float(eps)

    vmem_cap, default_target = _vmem_caps()
    if target_block_bytes is None:
        # Keep roughly the same element count per block independent of dtype
        # (the f32 temporaries dominate VMEM anyway): 4 MiB f32 / 2 MiB bf16 on v7x, etc.
        target_block_bytes = max(default_target * itemsize // 4, 1 << 20)

    # TODO(synk): the trailing torch.nan_to_num(out) is folded into wrapper-side
    # sanitization of weight/bias (per perf review); semantics differ only for
    # non-finite or ~1e32-scale affine params (clamped input + rsqrt(var+eps) otherwise
    # guarantees a finite output), never for sane parameters.
    w32 = jnp.nan_to_num(weight.astype(jnp.float32), nan=0.0, posinf=_BIG, neginf=-_BIG)
    b32 = jnp.nan_to_num(bias.astype(jnp.float32), nan=0.0, posinf=_BIG, neginf=-_BIG)

    divs = _divisors(G)

    # Layout choice: padded VMEM footprint of one group in each layout.
    pad4d = _round_up(Cg, 8) * _round_up(max(L, 1), 128)
    padflat = _round_up(M, 128)
    wb_expand_bytes = 2 * G * M * 4
    use_flat = (padflat < pad4d) and (wb_expand_bytes <= (32 << 20))

    group_native_bytes = M * itemsize
    force_chunk = (max_group_block_bytes is not None
                   and group_native_bytes > int(max_group_block_bytes))

    gb = None
    if not force_chunk:
        if use_flat:
            # Second-to-last block dim must be a multiple of the sublane tile (8 for
            # f32, 16 for bf16, ...) or equal to the full dim G.
            sub = max(8 * 4 // itemsize, 8)
            valid = sorted({d for d in divs if d % sub == 0} | {G})
            gb = _choose_gb(valid, G, N, M, itemsize, target_block_bytes, vmem_cap, True)
            if gb is None:
                use_flat = False
        if not use_flat:
            gb = _choose_gb(divs, G, N, M, itemsize, target_block_bytes, vmem_cap, False)

    if (gb is not None) and (not force_chunk):
        grid = (G // gb, N)                  # group chunks OUTER: params re-fetched only
        dim_sem = ("parallel", "parallel")   # when the group chunk changes.
        scratch = []
        if use_flat:
            x_k = x.reshape(N, G, M)
            w_k = jnp.broadcast_to(w32.reshape(G, Cg, 1), (G, Cg, L)).reshape(G // gb, gb, M)
            b_k = jnp.broadcast_to(b32.reshape(G, Cg, 1), (G, Cg, L)).reshape(G // gb, gb, M)
            xo_spec = pl.BlockSpec((1, gb, M), lambda g, n: (n, g, 0))
            wb_spec = pl.BlockSpec((1, gb, M), lambda g, n: (g, 0, 0))
            kernel = functools.partial(_sgn_kernel_flat, eps=eps)
            out_shape = jax.ShapeDtypeStruct((N, G, M), x.dtype)
        else:
            x_k = x.reshape(N, G, Cg, L)
            w_k = w32.reshape(G // gb, gb, Cg, 1)
            b_k = b32.reshape(G // gb, gb, Cg, 1)
            xo_spec = pl.BlockSpec((1, gb, Cg, L), lambda g, n: (n, g, 0, 0))
            wb_spec = pl.BlockSpec((1, gb, Cg, 1), lambda g, n: (g, 0, 0, 0))
            kernel = functools.partial(_sgn_kernel_grouped, eps=eps)
            out_shape = jax.ShapeDtypeStruct((N, G, Cg, L), x.dtype)
        in_specs = [xo_spec, wb_spec, wb_spec]
        out_specs = xo_spec
        need = _vmem_need(gb * M, itemsize, use_flat)
    else:
        # Chunked fallback: one group does not fit the block budget (v7x 64 MiB VMEM),
        # or chunking was forced for testing.
        chunk_budget = int(max_group_block_bytes) if force_chunk else target_block_bytes
        max_lc = max(chunk_budget // max(Cg * itemsize, 1), 1)
        lc_cands = [d for d in _divisors(L) if d <= max_lc and (d % 128 == 0 or d == L)]
        lc = max(lc_cands) if lc_cands else L
        n_chunks = L // lc
        # (If no lane-aligned divisor exists, lc == L and we simply run one chunk per
        #  group in two sweeps — same semantics, just no VMEM savings.)

        x_k = x.reshape(N, G, Cg, L)
        w_k = w32.reshape(G, Cg, 1)
        b_k = b32.reshape(G, Cg, 1)
        x_spec = pl.BlockSpec(
            (1, 1, Cg, lc),
            lambda n, g, t: (n, g, 0, jnp.where(t < n_chunks, t, t - n_chunks)))
        o_spec = pl.BlockSpec(
            (1, 1, Cg, lc),
            lambda n, g, t: (n, g, 0, jnp.where(t < n_chunks, 0, t - n_chunks)))
        wb_spec = pl.BlockSpec((1, Cg, 1), lambda n, g, t: (g, 0, 0))
        kernel = functools.partial(_sgn_kernel_chunked, eps=eps, n_chunks=n_chunks)
        grid = (N, G, 2 * n_chunks)
        in_specs = [x_spec, wb_spec, wb_spec]
        out_specs = o_spec
        out_shape = jax.ShapeDtypeStruct((N, G, Cg, L), x.dtype)
        scratch = [pltpu.SMEM((3,), jnp.float32)]
        dim_sem = ("parallel", "parallel", "arbitrary")
        need = _vmem_need(Cg * lc, itemsize, False)

    vmem_limit = int(min(max(int(need * 1.25), 16 << 20), vmem_cap))

    out = pl.pallas_call(
        kernel,
        out_shape=out_shape,
        grid_spec=pltpu.PrefetchScalarGridSpec(
            num_scalar_prefetch=0,
            grid=grid,
            in_specs=in_specs,
            out_specs=out_specs,
            scratch_shapes=scratch,
        ),
        compiler_params=pltpu.CompilerParams(
            dimension_semantics=dim_sem,
            vmem_limit_bytes=vmem_limit,
        ),
    )(x_k, w_k, b_k)

    return out.reshape(N, C, H, W)


# ---------------------------------------------------------------------------
# Pure-JAX reference (mirrors the PyTorch module) + tests
# ---------------------------------------------------------------------------

def _reference(x, weight, bias, *, num_groups, eps=1e-4):
    N, C, H, W = x.shape
    x = x.astype(jnp.float32)
    x = jnp.nan_to_num(x, nan=0.0, posinf=_BIG, neginf=-_BIG)
    x = jnp.clip(x, -_BIG, _BIG)
    xg = x.reshape(N, num_groups, -1)
    mean = jnp.mean(xg, axis=-1, keepdims=True)
    var = jnp.mean((xg - mean) ** 2, axis=-1, keepdims=True)
    xn = ((xg - mean) / jnp.sqrt(var + eps)).reshape(N, C, H, W)
    out = xn * weight[None, :, None, None] + bias[None, :, None, None]
    out = jnp.nan_to_num(out, nan=0.0, posinf=_BIG, neginf=-_BIG)
    return out


if __name__ == "__main__":
    key = jax.random.PRNGKey(0)

    def run_case(N, C, H, W, G, seed_key, dtype=jnp.float32, atol=1e-3, rtol=1e-3,
                 **kwargs):
        k_x, k_w, k_b = jax.random.split(seed_key, 3)
        x = jax.random.normal(k_x, (N, C, H, W), dtype=jnp.float32) * 3.0
        # inject non-finite values to exercise the "safe" path
        x = x.at[0, 0, 0, 0].set(jnp.nan)
        x = x.at[N - 1, C - 1, H - 1, W - 1].set(jnp.inf)
        x = x.at[0, C // 2, 0, 0].set(-jnp.inf)
        x = x.astype(dtype)
        weight = 1.0 + 0.1 * jax.random.normal(k_w, (C,), dtype=jnp.float32)
        bias = 0.1 * jax.random.normal(k_b, (C,), dtype=jnp.float32)

        out = safe_group_norm(x, weight, bias, num_groups=G, eps=1e-4, **kwargs)
        out = jax.block_until_ready(out)
        ref = _reference(x, weight, bias, num_groups=G, eps=1e-4)
        assert out.shape == (N, C, H, W) and out.dtype == dtype
        ok = jnp.allclose(out.astype(jnp.float32), ref, atol=atol, rtol=rtol)
        err = float(jnp.max(jnp.abs(out.astype(jnp.float32) - ref)))
        assert bool(ok), f"mismatch vs reference (max abs err {err})"

    k = jax.random.split(key, 5)
    # 1) lane-dense flat path (Cg=2 would waste 4x in the 4-D layout; M=512 is 128-aligned)
    run_case(2, 8, 16, 16, 4, seed_key=k[0])
    # 2) dense 4-D grouped path (Cg=8, L=128 -> zero padding waste, tiny affine params)
    run_case(2, 32, 8, 16, 4, seed_key=k[1])
    # 3) RWKV-TimeMixer-style shape: per-head GroupNorm with L == 1 (flat path, M=Cg)
    run_case(8, 64, 1, 1, 8, seed_key=k[2])
    # 4) forced chunked path (large-group / v7x-VMEM fallback): Lc=128, 2 chunks per group
    run_case(2, 8, 16, 16, 4, seed_key=k[3], max_group_block_bytes=1024)
    # 5) bf16 activations through the flat path (stats still f32 inside the kernel)
    run_case(2, 8, 16, 16, 4, seed_key=k[4], dtype=jnp.bfloat16, atol=5e-2, rtol=5e-2)

    print("KERNEL_OK")
</pallas_src>

<mosaic_0001>
module attributes {stable_mosaic.version = 11 : i64} {
  func.func @_sgn_kernel_flat(%arg0: i32, %arg1: i32, %arg2: memref<1x4x512xf32, #tpu.memory_space<vmem>>, %arg3: memref<1x4x512xf32, #tpu.memory_space<vmem>>, %arg4: memref<1x4x512xf32, #tpu.memory_space<vmem>>, %arg5: memref<1x4x512xf32, #tpu.memory_space<vmem>>) attributes {dimension_semantics = [#tpu.dimension_semantics<parallel>, #tpu.dimension_semantics<parallel>], iteration_bounds = array<i64: 1, 2>, scalar_prefetch = 0 : i64, scratch_operands = 0 : i64, tpu.core_type = #tpu.core_type<tc>, window_params = [{transform_indices = @transform_0, window_bounds = array<i64: 1, 4, 512>}, {transform_indices = @transform_1, window_bounds = array<i64: 1, 4, 512>}, {transform_indices = @transform_2, window_bounds = array<i64: 1, 4, 512>}, {transform_indices = @transform_3, window_bounds = array<i64: 1, 4, 512>}]} {
    %c0 = arith.constant 0 : index
    %c0_0 = arith.constant 0 : index
    %c0_1 = arith.constant 0 : index
    %0 = vector.load %arg2[%c0, %c0_0, %c0_1] : memref<1x4x512xf32, #tpu.memory_space<vmem>>, vector<1x4x512xf32>
    %1 = vector.shape_cast %0 : vector<1x4x512xf32> to vector<4x512xf32>
    %2 = arith.cmpf one, %1, %1 : vector<4x512xf32>
    %cst = arith.constant 0.000000e+00 : f32
    %3 = vector.broadcast %cst : f32 to vector<4x512xf32>
    %4 = arith.select %2, %3, %1 : vector<4x512xi1>, vector<4x512xf32>
    %cst_2 = arith.constant -1.000000e+04 : f32
    %cst_3 = arith.constant 1.000000e+04 : f32
    %5 = vector.broadcast %cst_2 : f32 to vector<4x512xf32>
    %6 = arith.maximumf %5, %4 : vector<4x512xf32>
    %7 = vector.broadcast %cst_3 : f32 to vector<4x512xf32>
    %8 = arith.minimumf %7, %6 : vector<4x512xf32>
    %cst_4 = arith.constant dense<0.000000e+00> : vector<4xf32>
    %9 = vector.multi_reduction <add>, %8, %cst_4 [1] : vector<4x512xf32> to vector<4xf32>
    %10 = vector.shape_cast %9 : vector<4xf32> to vector<4x1xf32>
    %cst_5 = arith.constant 5.120000e+02 : f32
    %11 = vector.broadcast %cst_5 : f32 to vector<4x1xf32>
    %12 = arith.divf %10, %11 : vector<4x1xf32>
    %13 = vector.broadcast %12 : vector<4x1xf32> to vector<4x512xf32>
    %14 = arith.subf %8, %13 : vector<4x512xf32>
    %15 = arith.mulf %14, %14 : vector<4x512xf32>
    %cst_6 = arith.constant dense<0.000000e+00> : vector<4xf32>
    %16 = vector.multi_reduction <add>, %15, %cst_6 [1] : vector<4x512xf32> to vector<4xf32>
    %17 = vector.shape_cast %16 : vector<4xf32> to vector<4x1xf32>
    %cst_7 = arith.constant 5.120000e+02 : f32
    %18 = vector.broadcast %cst_7 : f32 to vector<4x1xf32>
    %19 = arith.divf %17, %18 : vector<4x1xf32>
    %cst_8 = arith.constant 9.99999974E-5 : f32
    %20 = vector.broadcast %cst_8 : f32 to vector<4x1xf32>
    %21 = arith.addf %19, %20 : vector<4x1xf32>
    %22 = math.rsqrt %21 : vector<4x1xf32>
    %c0_9 = arith.constant 0 : index
    %c0_10 = arith.constant 0 : index
    %c0_11 = arith.constant 0 : index
    %23 = vector.load %arg3[%c0_9, %c0_10, %c0_11] : memref<1x4x512xf32, #tpu.memory_space<vmem>>, vector<1x4x512xf32>
    %24 = vector.shape_cast %23 : vector<1x4x512xf32> to vector<4x512xf32>
    %25 = vector.broadcast %22 : vector<4x1xf32> to vector<4x512xf32>
    %26 = arith.mulf %25, %24 : vector<4x512xf32>
    %27 = arith.mulf %14, %26 : vector<4x512xf32>
    %c0_12 = arith.constant 0 : index
    %c0_13 = arith.constant 0 : index
    %c0_14 = arith.constant 0 : index
    %28 = vector.load %arg4[%c0_12, %c0_13, %c0_14] : memref<1x4x512xf32, #tpu.memory_space<vmem>>, vector<1x4x512xf32>
    %29 = vector.shape_cast %28 : vector<1x4x512xf32> to vector<4x512xf32>
    %30 = arith.addf %27, %29 : vector<4x512xf32>
    %c0_15 = arith.constant 0 : index
    %c0_16 = arith.constant 0 : index
    %c0_17 = arith.constant 0 : index
    %31 = vector.load %arg5[%c0_15, %c0_16, %c0_17] : memref<1x4x512xf32, #tpu.memory_space<vmem>>, vector<1x4x512xf32>
    %32 = vector.shape_cast %31 : vector<1x4x512xf32> to vector<4x512xf32>
    %33 = vector.shape_cast %30 : vector<4x512xf32> to vector<1x4x512xf32>
    tpu.vector_store %arg5[%c0_15, %c0_16, %c0_17], %33 {strides = array<i32>} : memref<1x4x512xf32, #tpu.memory_space<vmem>>, vector<1x4x512xf32>,
    return
  }
  func.func @transform_0(%arg0: i32, %arg1: i32) -> (i32, i32, i32) {
    %c0_i32 = arith.constant 0 : i32
    %c0_i32_0 = arith.constant 0 : i32
    return %arg1, %arg0, %c0_i32 : i32, i32, i32
  }
  func.func @transform_1(%arg0: i32, %arg1: i32) -> (i32, i32, i32) {
    %c0_i32 = arith.constant 0 : i32
    %c0_i32_0 = arith.constant 0 : i32
    %c0_i32_1 = arith.constant 0 : i32
    return %arg0, %c0_i32, %c0_i32_0 : i32, i32, i32
  }
  func.func @transform_2(%arg0: i32, %arg1: i32) -> (i32, i32, i32) {
    %c0_i32 = arith.constant 0 : i32
    %c0_i32_0 = arith.constant 0 : i32
    %c0_i32_1 = arith.constant 0 : i32
    return %arg0, %c0_i32, %c0_i32_0 : i32, i32, i32
  }
  func.func @transform_3(%arg0: i32, %arg1: i32) -> (i32, i32, i32) {
    %c0_i32 = arith.constant 0 : i32
    %c0_i32_0 = arith.constant 0 : i32
    return %arg1, %arg0, %c0_i32 : i32, i32, i32
  }
}

</mosaic_0001>

<llo_original>
// kernel: tpu_custom_call.1
$region0: #{tpu_custom_call.1}
  #allocation0 [shape = 'u32[]', space=smem, size = 0x4, offset = 0x4, fixed_abs, tag = 'smem constant byte address 0x4 - core index']
  #allocation1 [shape = 'u32[144,128]{1,0:T(1,128)}', space=vmem, size = 0x12000, scoped, tag = 'internal scratch']
  %s0 = inlined_call_operand.hbm [shape: f32[2,4,512], index: 0, kind: input, shape index: {}]
  %s1 = inlined_call_operand.hbm [shape: f32[1,4,512], index: 1, kind: input, shape index: {}]
  %s2 = inlined_call_operand.hbm [shape: f32[1,4,512], index: 2, kind: input, shape index: {}]
  %s3 = inlined_call_operand.hbm [shape: f32[2,4,512], index: 3, kind: output, shape index: {}]
  %s4 = sld [smem:[#allocation0]]
  $region57: #{tpu_custom_call.1} parent=0
    _
  %s6 = ssub.s32 1, %s4
  %s7 = scalar_select 0, %s6, %s4
  $region1: #{tpu_custom_call.1} parent=0
    #allocation2 [shape = 'u8[16384]{0}', space=vmem, size = 0x4000, scoped, tag = 'input window, operand 0']
    #allocation3 [shape = 's32[2]{0}', space=sflag, size = 0x8, scoped, tag = 'scoped memory for tpu_custom_call.1']
    #allocation4 [shape = 's32[2]{0}', space=sflag, size = 0x8, scoped, tag = 'scoped memory for tpu_custom_call.1']
    #allocation5 [shape = 'u8[8192]{0}', space=vmem, size = 0x2000, scoped, tag = 'input window, operand 1, single buffered']
    #allocation6 [shape = 's32[1]{0}', space=sflag, size = 0x4, scoped, tag = 'scoped memory for tpu_custom_call.1']
    #allocation7 [shape = 'u8[8192]{0}', space=vmem, size = 0x2000, scoped, tag = 'input window, operand 2, single buffered']
    #allocation8 [shape = 'u8[16384]{0}', space=vmem, size = 0x4000, scoped, tag = 'output window, operand 0']
    %8 = vsyncpa [#allocation3], 0
    %s9 = scalar_lea.sflag [#allocation3], 1
    %10 = vsyncpa %s9, 0
    %11 = vsyncpa [#allocation6], 0
    %12 = vsyncpa [#allocation4], 0
    %s13 = scalar_lea.sflag [#allocation4], 1
    %14 = vsyncpa %s13, 0
    loop: start=0, step=1, limit=4
    $region2: #{tpu_custom_call.1} parent=1 // loop_pre_header
      _
    $region3: #{tpu_custom_call.1} parent=1 // loop_header
      %s16 = sphi 0, %s20
      %p17 = scmp.ge.s32.totalorder %s16, 4
      %s23 = sphi 0, %s35
      %s24 = sphi 0, %s31
      %s25 = sphi 0, %s23
      %s26 = sphi 0, %s24
      %s27 = sphi 0, %s25
      %s28 = sphi 0, %s26
      %s40 = sphi 0, %s42
      %s43 = sphi 0, %s40
      %s44 = sphi 0, %s43
      %s60 = sphi 0, %s44
      %s66 = sphi 0, %s68
      %s69 = sphi 0, %s66
      %s70 = sphi 0, %s69
      %s86 = sphi 0, %s70
      %s92 = sphi 0, %s94
      %s95 = sphi 0, %s92
      %s96 = sphi 0, %s95
      %s112 = sphi 0, %s96
      %s120 = sphi 0, %s122
      %s123 = sphi 0, %s120
      %s124 = sphi 0, %s123
      %s140 = sphi 0, %s124
    $region4: #{tpu_custom_call.1} parent=1 // loop_header_branch
      %19 = sbr.rel (%p17) target = $region8
    $region5: #{tpu_custom_call.1} parent=1 // loop_body
      %s21 = ssub.s32 %s16, 1
      %s22 = ssub.s32 %s16, 2
      %s29 = sadd.s32 1, %s24
      %p30 = scmp.ge.s32.totalorder %s29, 2
      %s31 = scalar_select %p30, 0, %s29
      %s32 = sadd.s32 1, %s23
      %s33 = scalar_select %p30, %s32, %s23
      %p34 = scmp.ge.s32.totalorder %s33, 1
      %s35 = scalar_select %p34, 0, %s33
      %s36 = ssub.s32 %s24, %s31
      %s37 = ssub.s32 %s23, %s35
      %s38 = sor.u32 %s36, %s37
      %p39 = scmp.eq.s32.totalorder %s38, 0
      %s41 = sadd.s32 %s40, 1
      %s42 = scalar_select %p39, %s40, %s41
      %p45 = pneg %p39
      %p46 = scmp.eq.s32.totalorder %s16, 1
      %p47 = por %p45, %p46
      %p48 = scmp.ne.s32.totalorder %s40, %s43
      %p49 = scmp.eq.s32.totalorder %s16, 0
      %p50 = por %p48, %p49
      %p51 = scmp.ne.s32.totalorder %s40, %s43
      %p52 = scmp.eq.s32.totalorder %s21, 1
      %p53 = por %p51, %p52
      %p54 = scmp.ne.s32.totalorder %s43, %s44
      %p55 = scmp.eq.s32.totalorder %s21, 0
      %p56 = por %p54, %p55
      %p57 = scmp.ne.s32.totalorder %s43, %s44
      %p58 = scmp.eq.s32.totalorder %s22, 1
      %p59 = por %p57, %p58
      %p61 = scmp.ne.s32.totalorder %s44, %s60
      %p62 = scmp.eq.s32.totalorder %s22, 0
      %p63 = por %p61, %p62
      %s64 = ssub.s32 %s23, %s35
      %p65 = scmp.eq.s32.totalorder %s64, 0
      %s67 = sadd.s32 %s66, 1
      %s68 = scalar_select %p65, %s66, %s67
      %p71 = pneg %p65
      %p72 = scmp.eq.s32.totalorder %s16, 1
      %p73 = por %p71, %p72
      %p74 = scmp.ne.s32.totalorder %s66, %s69
      %p75 = scmp.eq.s32.totalorder %s16, 0
      %p76 = por %p74, %p75
      %p77 = scmp.ne.s32.totalorder %s66, %s69
      %p78 = scmp.eq.s32.totalorder %s21, 1
      %p79 = por %p77, %p78
      %p80 = scmp.ne.s32.totalorder %s69, %s70
      %p81 = scmp.eq.s32.totalorder %s21, 0
      %p82 = por %p80, %p81
      %p83 = scmp.ne.s32.totalorder %s69, %s70
      %p84 = scmp.eq.s32.totalorder %s22, 1
      %p85 = por %p83, %p84
      %p87 = scmp.ne.s32.totalorder %s70, %s86
      %p88 = scmp.eq.s32.totalorder %s22, 0
      %p89 = por %p87, %p88
      %s90 = ssub.s32 %s23, %s35
      %p91 = scmp.eq.s32.totalorder %s90, 0
      %s93 = sadd.s32 %s92, 1
      %s94 = scalar_select %p91, %s92, %s93
      %p97 = pneg %p91
      %p98 = scmp.eq.s32.totalorder %s16, 1
      %p99 = por %p97, %p98
      %p100 = scmp.ne.s32.totalorder %s92, %s95
      %p101 = scmp.eq.s32.totalorder %s16, 0
      %p102 = por %p100, %p101
      %p103 = scmp.ne.s32.totalorder %s92, %s95
      %p104 = scmp.eq.s32.totalorder %s21, 1
      %p105 = por %p103, %p104
      %p106 = scmp.ne.s32.totalorder %s95, %s96
      %p107 = scmp.eq.s32.totalorder %s21, 0
      %p108 = por %p106, %p107
      %p109 = scmp.ne.s32.totalorder %s95, %s96
      %p110 = scmp.eq.s32.totalorder %s22, 1
      %p111 = por %p109, %p110
      %p113 = scmp.ne.s32.totalorder %s96, %s112
      %p114 = scmp.eq.s32.totalorder %s22, 0
      %p115 = por %p113, %p114
      %s116 = ssub.s32 %s24, %s31
      %s117 = ssub.s32 %s23, %s35
      %s118 = sor.u32 %s116, %s117
      %p119 = scmp.eq.s32.totalorder %s118, 0
      %s121 = sadd.s32 %s120, 1
      %s122 = scalar_select %p119, %s120, %s121
      %p125 = pneg %p119
      %p126 = scmp.eq.s32.totalorder %s16, 1
      %p127 = por %p125, %p126
      %p128 = scmp.ne.s32.totalorder %s120, %s123
      %p129 = scmp.eq.s32.totalorder %s16, 0
      %p130 = por %p128, %p129
      %p131 = scmp.ne.s32.totalorder %s120, %s123
      %p132 = scmp.eq.s32.totalorder %s21, 1
      %p133 = por %p131, %p132
      %p134 = scmp.ne.s32.totalorder %s123, %s124
      %p135 = scmp.eq.s32.totalorder %s21, 0
      %p136 = por %p134, %p135
      %p137 = scmp.ne.s32.totalorder %s123, %s124
      %p138 = scmp.eq.s32.totalorder %s22, 1
      %p139 = por %p137, %p138
      %p141 = scmp.ne.s32.totalorder %s124, %s140
      %p142 = scmp.eq.s32.totalorder %s22, 0
      %p143 = por %p141, %p142
      %p144 = scmp.le.s32.totalorder 1, %s16
      %p145 = scmp.lt.s32.totalorder %s16, 3
      %p146 = pnand %p144, %p145
      %p147 = pneg %p146
      // Predicated region
      $region9: #{tpu_custom_call.1} parent=5 // pred_check
        _
      $region10: #{tpu_custom_call.1} parent=5 // pred_check_branch
        %149 = sbr.rel (%p146) target = $region12
      $region11: #{tpu_custom_call.1} parent=5 // pred_region
        %s150 = ssub.s32 %s16, 1
        // Predicated region
        $region13: #{tpu_custom_call.1} parent=11 // pred_check
          %p151 = pneg %p82
        $region14: #{tpu_custom_call.1} parent=11 // pred_check_branch
          %153 = sbr.rel (%p151) target = $region16
        $region15: #{tpu_custom_call.1} parent=11 // pred_region
          %s155 = ssub.s32 256, 256
          %156 = vsyncadd [#allocation6], %s155
          %s157 = smul.addr %s25, 4
          %s158 = smul.addr %s157, 64
          %s159 = scalar_lea.hbm %s1, %s158
          %s161 = sshll.u32 [#allocation5], 4
          %s162 = int_to_ptr.vmem [resolvable:$true] %s161
          %164 = dma.hbm_to_vmem [thread:$0]  %s159, 256, %s162, [#allocation6]
        $region16: #{tpu_custom_call.1} parent=11 // pred_fallthru
          _
        // Predicated region
        $region17: #{tpu_custom_call.1} parent=11 // pred_check
          %p165 = pneg %p108
        $region18: #{tpu_custom_call.1} parent=11 // pred_check_branch
          %167 = sbr.rel (%p165) target = $region20
        $region19: #{tpu_custom_call.1} parent=11 // pred_region
          %s169 = ssub.s32 256, 256
          %170 = vsyncadd [#allocation6], %s169
          %s171 = smul.addr %s25, 4
          %s172 = smul.addr %s171, 64
          %s173 = scalar_lea.hbm %s2, %s172
          %s175 = sshll.u32 [#allocation7], 4
          %s176 = int_to_ptr.vmem [resolvable:$true] %s175
          %178 = dma.hbm_to_vmem [thread:$0]  %s173, 256, %s176, [#allocation6]
        $region20: #{tpu_custom_call.1} parent=11 // pred_fallthru
          _
      $region12: #{tpu_custom_call.1} parent=5 // pred_fallthru
        _
      %p179 = scmp.lt.s32.totalorder %s16, 2
      // Predicated region
      $region21: #{tpu_custom_call.1} parent=5 // pred_check
        %p180 = pneg %p179
      $region22: #{tpu_custom_call.1} parent=5 // pred_check_branch
        %182 = sbr.rel (%p180) target = $region24
      $region23: #{tpu_custom_call.1} parent=5 // pred_region
        // Predicated region
        $region25: #{tpu_custom_call.1} parent=23 // pred_check
          %p183 = pneg %p50
        $region26: #{tpu_custom_call.1} parent=23 // pred_check_branch
          %185 = sbr.rel (%p183) target = $region28
        $region27: #{tpu_custom_call.1} parent=23 // pred_region
          %s186 = sand.u32 %s40, 1
          %s187 = scalar_lea.sflag [#allocation3], %s186
          %s188 = sand.u32 %s40, 1
          %s189 = smul.addr %s188, 16
          %s190 = scalar_lea.vmem [#allocation2], %s189
          %s192 = ssub.s32 256, 256
          %193 = vsyncadd %s187, %s192
          %s194 = smul.addr %s23, 4
          %s195 = smul.addr %s24, 4
          %s196 = sadd.s32 %s194, %s195
          %s197 = smul.addr %s196, 64
          %s198 = scalar_lea.hbm %s0, %s197
          %s200 = sshll.u32 %s190, 4
          %s201 = int_to_ptr.vmem [resolvable:$true] %s200
          %203 = dma.hbm_to_vmem [thread:$0]  %s198, 256, %s201, %s187
        $region28: #{tpu_custom_call.1} parent=23 // pred_fallthru
          _
      $region24: #{tpu_custom_call.1} parent=5 // pred_fallthru
        _
      %p204 = scmp.le.s32.totalorder 1, %s16
      %p205 = scmp.lt.s32.totalorder %s16, 3
      %p206 = pnand %p204, %p205
      %p207 = pneg %p206
      // Predicated region
      $region29: #{tpu_custom_call.1} parent=5 // pred_check
        _
      $region30: #{tpu_custom_call.1} parent=5 // pred_check_branch
        %209 = sbr.rel (%p206) target = $region32
      $region31: #{tpu_custom_call.1} parent=5 // pred_region
        %s210 = ssub.s32 %s16, 1
        %s211 = sand.u32 %s43, 1
        %s212 = scalar_lea.sflag [#allocation3], %s211
        %s213 = sand.u32 %s43, 1
        %s214 = smul.addr %s213, 16
        %s215 = scalar_lea.vmem [#allocation2], %s214
        // Predicated region
        $region33: #{tpu_custom_call.1} parent=31 // pred_check
          %p216 = pneg %p56
        $region34: #{tpu_custom_call.1} parent=31 // pred_check_branch
          %218 = sbr.rel (%p216) target = $region36
        $region35: #{tpu_custom_call.1} parent=31 // pred_region
          %219 = dma.done %s212, 256
        $region36: #{tpu_custom_call.1} parent=31 // pred_fallthru
          _
        // Predicated region
        $region37: #{tpu_custom_call.1} parent=31 // pred_check
          %p220 = pneg %p82
        $region38: #{tpu_custom_call.1} parent=31 // pred_check_branch
          %222 = sbr.rel (%p220) target = $region40
        $region39: #{tpu_custom_call.1} parent=31 // pred_region
          %223 = dma.done [#allocation6], 256
        $region40: #{tpu_custom_call.1} parent=31 // pred_fallthru
          _
        // Predicated region
        $region41: #{tpu_custom_call.1} parent=31 // pred_check
          %p224 = pneg %p108
        $region42: #{tpu_custom_call.1} parent=31 // pred_check_branch
          %226 = sbr.rel (%p224) target = $region44
        $region43: #{tpu_custom_call.1} parent=31 // pred_region
          %227 = dma.done [#allocation6], 256
        $region44: #{tpu_custom_call.1} parent=31 // pred_fallthru
          _
        %s228 = sand.u32 %s43, 1
        %s229 = scalar_lea.sflag [#allocation3], %s228
        %s230 = sand.u32 %s43, 1
        %s231 = smul.addr %s230, 16
        %s232 = scalar_lea.vmem [#allocation2], %s231
        %p233 = pneg %p56
        %p234 = pneg %p53
        %p235 = pneg %p82
        %p236 = pneg %p79
        %p237 = pneg %p108
        %p238 = pneg %p105
        %p239 = pneg %p136
        %p240 = pneg %p133
        %s241 = sand.u32 %s123, 1
        %s242 = scalar_lea.sflag [#allocation4], %s241
        %s243 = sand.u32 %s123, 1
        %s244 = smul.addr %s243, 16
        %s245 = scalar_lea.vmem [#allocation8], %s244
        %v246 = vld [vmem:[%s215] sm:$0xff]
        %v247 = vld [vmem:[%s215 + $0x8] sm:$0xff]
        %vm248 = vcmp.ne.f32.partialorder %v246, %v246
        %vm249 = vcmp.ne.f32.partialorder %v247, %v247
        %v250 = vsel %vm248, 0.0, %v246
        %v251 = vsel %vm249, 0.0, %v247
        %v252 = vmax.f32 %v250, -10000.0
        %v253 = vmax.f32 %v251, -10000.0
        %v254 = vmin.f32 %v252, 10000.0
        %v255 = vmin.f32 %v253, 10000.0
        %v258 = vcombine.high %v254, %v254
        %v259 = vcombine.high %v255, %v255
        %vm262 = vcmask 1043456
        %v263 = vsel %vm262, %v254, 0.0
        %v264 = vsel %vm262, %v258, 0.0
        %v265 = vadd.f32 %v263, %v264
        %v266 = vsel %vm262, %v255, 0.0
        %v267 = vadd.f32 %v265, %v266
        %v268 = vsel %vm262, %v259, 0.0
        %v269 = vadd.f32 %v267, %v268
        %270 = vadd.xlane.f32.xlu0 %v269
        %v271 = vpop.xlane.xlu0 %270
        %v272 = vrcp.pop 512.0
        %v273 = vmul.f32 %v271, %v272
        %v276 = vunpack.c.l.s4 839922192
        %v277 = vunpack.c.0.s8 %v276
        %v278 = vlaneseq
        %v279 = vshrl.u32 %v278, 7
        %v280 = vsub.s32 %v277, %v279
        %v281 = vrot.slane %v273, %v280
        %v283 = vsub.f32 %v254, %v281
        %v284 = vsub.f32 %v255, %v281
        %v285 = vmul.f32 %v283, %v283
        %v286 = vmul.f32 %v284, %v284
        %v289 = vcombine.high %v285, %v285
        %v290 = vcombine.high %v286, %v286
        %v293 = vsel %vm262, %v285, 0.0
        %v294 = vsel %vm262, %v289, 0.0
        %v295 = vadd.f32 %v293, %v294
        %v296 = vsel %vm262, %v286, 0.0
        %v297 = vadd.f32 %v295, %v296
        %v298 = vsel %vm262, %v290, 0.0
        %v299 = vadd.f32 %v297, %v298
        %300 = vadd.xlane.f32.xlu0 %v299
        %v301 = vpop.xlane.xlu0 %300
        %v302 = vmul.f32 %v301, %v272
        %v303 = vadd.f32 %v302, 0.0001
        %v304 = vrsqrt.pop %v303
        %v305 = vld [vmem:[#allocation5] sm:$0xff]
        %v306 = vld [vmem:[#allocation5 + $0x8] sm:$0xff]
        %v309 = vcombine.high %v305, %v305
        %v310 = vcombine.high %v306, %v306
        %v313 = vmul.f32 %v304, %v305
        %v314 = vmul.f32 %v304, %v309
        %v315 = vmul.f32 %v304, %v306
        %v316 = vmul.f32 %v304, %v310
        %v321 = vcombine.low %v313, %v314
        %v322 = vcombine.low %v315, %v316
        %v325 = vmul.f32 %v283, %v321
        %v326 = vmul.f32 %v284, %v322
        %v327 = vld [vmem:[#allocation7] sm:$0xff]
        %v328 = vld [vmem:[#allocation7 + $0x8] sm:$0xff]
        %v329 = vadd.f32 %v325, %v327
        %v330 = vadd.f32 %v326, %v328
        %331 = vst [vmem:[%s245] sm:$0xff] %v329
        %332 = vst [vmem:[%s245 + $0x8] sm:$0xff] %v330
        %s333 = sand.u32 %s123, 1
        %s334 = scalar_lea.sflag [#allocation4], %s333
        %s335 = sand.u32 %s123, 1
        %s336 = smul.addr %s335, 16
        %s337 = scalar_lea.vmem [#allocation8], %s336
        // Predicated region
        $region45: #{tpu_custom_call.1} parent=31 // pred_check
          %p338 = pneg %p133
        $region46: #{tpu_custom_call.1} parent=31 // pred_check_branch
          %340 = sbr.rel (%p338) target = $region48
        $region47: #{tpu_custom_call.1} parent=31 // pred_region
          %s342 = ssub.s32 256, 256
          %343 = vsyncadd %s334, %s342
          %s344 = smul.addr %s25, 4
          %s345 = smul.addr %s26, 4
          %s346 = sadd.s32 %s344, %s345
          %s347 = smul.addr %s346, 64
          %s348 = scalar_lea.hbm %s3, %s347
          %s350 = sshll.u32 %s337, 4
          %s351 = int_to_ptr.vmem [resolvable:$true] %s350
          %353 = dma.vmem_to_hbm [thread:$0]  %s351, 256, %s348, %s334
        $region48: #{tpu_custom_call.1} parent=31 // pred_fallthru
          _
      $region32: #{tpu_custom_call.1} parent=5 // pred_fallthru
        _
      %p354 = scmp.le.s32.totalorder 2, %s16
      // Predicated region
      $region49: #{tpu_custom_call.1} parent=5 // pred_check
        %p355 = pneg %p354
      $region50: #{tpu_custom_call.1} parent=5 // pred_check_branch
        %357 = sbr.rel (%p355) target = $region52
      $region51: #{tpu_custom_call.1} parent=5 // pred_region
        %s358 = ssub.s32 %s16, 2
        // Predicated region
        $region53: #{tpu_custom_call.1} parent=51 // pred_check
          %p359 = pneg %p139
        $region54: #{tpu_custom_call.1} parent=51 // pred_check_branch
          %361 = sbr.rel (%p359) target = $region56
        $region55: #{tpu_custom_call.1} parent=51 // pred_region
          %s362 = sand.u32 %s124, 1
          %s363 = scalar_lea.sflag [#allocation4], %s362
          %s364 = sand.u32 %s124, 1
          %s365 = smul.addr %s364, 16
          %s366 = scalar_lea.vmem [#allocation8], %s365
          %367 = dma.done %s363, 256
        $region56: #{tpu_custom_call.1} parent=51 // pred_fallthru
          _
      $region52: #{tpu_custom_call.1} parent=5 // pred_fallthru
        _
    $region6: #{tpu_custom_call.1} parent=1 // loop_footer
      %s20 = sadd.s32 1, %s16
    $region7: #{tpu_custom_call.1} parent=1 // loop_footer_branch
      %15 = sbr.rel target = $region3
    $region8: #{tpu_custom_call.1} parent=1 // loop_exit
      _
    %368 = vsyncpa [#allocation3], 1
    %s369 = scalar_lea.sflag [#allocation3], 1
    %370 = vsyncpa %s369, 1
    %371 = vsyncpa [#allocation6], 1
    %372 = vsyncpa [#allocation4], 1
    %s373 = scalar_lea.sflag [#allocation4], 1
    %374 = vsyncpa %s373, 1

</llo_original>
